<compile_context>
chip_gen: v5e
topology: v5e:2x2
jax: 0.10.0
libtpu: 0.0.40
codegen_flags: <defaults>
</compile_context>

<pallas_src>
import jax
import jax.numpy as jnp
from jax import lax
from jax.experimental import pallas as pl
from jax.experimental.pallas import tpu as pltpu


def _round_up(x: int, m: int) -> int:
    return ((x + m - 1) // m) * m


def _nonneg_linear_kernel(x_ref, w_ref, b_ref, o_ref, acc_ref):
    k = pl.program_id(2)

    @pl.when(k == 0)
    def _():
        acc_ref[...] = jnp.zeros_like(acc_ref)

    x = x_ref[...]                                # (tm, tk)
    w = jnp.maximum(w_ref[...], 0.0)              # (tn, tk), ReLU on VPU, per tile
    # Contract the last (lane) dim of both operands -> (tm, tn); no w.T needed.
    acc_ref[...] += lax.dot_general(
        x, w,
        dimension_numbers=(((1,), (1,)), ((), ())),
        preferred_element_type=jnp.float32,
    )

    @pl.when(k == pl.num_programs(2) - 1)
    def _():
        # Bias only at finalize (otherwise it would be added K//tk times).
        o_ref[...] = (acc_ref[...] + b_ref[...]).astype(o_ref.dtype)


def nonneg_linear(x, weight, bias=None, *, tm=256, tn=256, tk=512):
    """x: (B, In), weight: (Out, In), bias: (Out,) or None -> (B, Out)."""
    B, In = x.shape
    Out, In_w = weight.shape
    assert In == In_w, "in_features mismatch"
    dtype = x.dtype
    if bias is None:
        bias = jnp.zeros((Out,), dtype=dtype)

    # Clamp tile sizes to (padded) problem dims; keep lane dims 128-aligned and
    # sublane dims 8-aligned so stores are unmasked and blocks are legal.
    tm = min(tm, _round_up(B, 8))
    tn = min(tn, _round_up(Out, 128))
    tk = min(tk, _round_up(In, 128))

    Bp = _round_up(B, tm)
    Inp = _round_up(In, tk)
    Outp = _round_up(Out, tn)

    # Zero-pad: relu(0)=0 and padded x columns are zero, so extra K contributes 0.
    xp = x if (Bp == B and Inp == In) else jnp.pad(x, ((0, Bp - B), (0, Inp - In)))
    wp = weight if (Outp == Out and Inp == In) else jnp.pad(
        weight, ((0, Outp - Out), (0, Inp - In)))
    bp = jnp.pad(bias, (0, Outp - Out)).reshape(1, Outp)

    grid = (Bp // tm, Outp // tn, Inp // tk)  # reduction (K) axis last

    # Rough VMEM budget: double-buffered input tiles + acc scratch + out tile,
    # with 2x margin; capped for v7x's 64 MiB physical VMEM.
    est = 4 * (2 * (tm * tk + tn * tk + tn) + tm * tn + 2 * tm * tn)
    vmem_limit = int(min(max(2 * est, 32 * 1024 * 1024), 64 * 1024 * 1024))

    out = pl.pallas_call(
        _nonneg_linear_kernel,
        out_shape=jax.ShapeDtypeStruct((Bp, Outp), dtype),
        grid_spec=pltpu.PrefetchScalarGridSpec(
            num_scalar_prefetch=0,
            grid=grid,
            in_specs=[
                pl.BlockSpec((tm, tk), lambda i, j, k: (i, k)),   # x tile
                pl.BlockSpec((tn, tk), lambda i, j, k: (j, k)),   # W tile (Out, In)
                pl.BlockSpec((1, tn), lambda i, j, k: (0, j)),    # bias tile
            ],
            out_specs=pl.BlockSpec((tm, tn), lambda i, j, k: (i, j)),
            scratch_shapes=[pltpu.VMEM((tm, tn), jnp.float32)],
        ),
        compiler_params=pltpu.CompilerParams(
            dimension_semantics=("parallel", "parallel", "arbitrary"),
            vmem_limit_bytes=vmem_limit,
        ),
    )(xp, wp, bp)

    return out[:B, :Out]


if __name__ == "__main__":
    key = jax.random.PRNGKey(0)
    k_x, k_w, k_b = jax.random.split(key, 3)

    batch = 8
    in_features = 32
    out_features = 16

    # Deterministic synthetic parameters (torch.empty is uninitialized; we use
    # random values so the ReLU on weights actually matters).
    x = jax.random.normal(k_x, (batch, in_features), dtype=jnp.float32)
    weight = jax.random.normal(k_w, (out_features, in_features), dtype=jnp.float32)
    bias = jax.random.normal(k_b, (out_features,), dtype=jnp.float32)
    # normalization_multiplier = jnp.ones((1,))  # unused in forward, kept for parity

    out = nonneg_linear(x, weight, bias)
    out = jax.block_until_ready(out)

    # Reference check in plain JAX.
    ref = x @ jnp.maximum(weight, 0.0).T + bias
    assert out.shape == (batch, out_features)
    assert jnp.allclose(out, ref, atol=1e-5, rtol=1e-5), "mismatch vs reference"

    print("KERNEL_OK")
</pallas_src>

<mosaic_0001>
module attributes {stable_mosaic.version = 11 : i64} {
  func.func @_nonneg_linear_kernel(%arg0: i32, %arg1: i32, %arg2: i32, %arg3: memref<8x128xf32, #tpu.memory_space<vmem>>, %arg4: memref<128x128xf32, #tpu.memory_space<vmem>>, %arg5: memref<1x128xf32, #tpu.memory_space<vmem>>, %arg6: memref<8x128xf32, #tpu.memory_space<vmem>>, %arg7: memref<8x128xf32, #tpu.memory_space<vmem>>) attributes {dimension_semantics = [#tpu.dimension_semantics<parallel>, #tpu.dimension_semantics<parallel>, #tpu.dimension_semantics<arbitrary>], iteration_bounds = array<i64: 1, 1, 1>, scalar_prefetch = 0 : i64, scratch_operands = 1 : i64, tpu.core_type = #tpu.core_type<tc>, window_params = [{transform_indices = @transform_0, window_bounds = array<i64: 8, 128>}, {transform_indices = @transform_1, window_bounds = array<i64: 128, 128>}, {transform_indices = @transform_2, window_bounds = array<i64: 1, 128>}, {transform_indices = @transform_3, window_bounds = array<i64: 8, 128>}]} {
    %c0_i32 = arith.constant 0 : i32
    %0 = arith.cmpi eq, %arg2, %c0_i32 : i32
    %1 = arith.extui %0 : i1 to i32
    %c0_i32_0 = arith.constant 0 : i32
    %2 = arith.cmpi ne, %1, %c0_i32_0 : i32
    scf.if %2 {
      %cst_11 = arith.constant 0.000000e+00 : f32
      %14 = vector.broadcast %cst_11 : f32 to vector<8x128xf32>
      %c0_12 = arith.constant 0 : index
      %c0_13 = arith.constant 0 : index
      %15 = vector.load %arg7[%c0_12, %c0_13] : memref<8x128xf32, #tpu.memory_space<vmem>>, vector<8x128xf32>
      tpu.vector_store %arg7[%c0_12, %c0_13], %14 {strides = array<i32>} : memref<8x128xf32, #tpu.memory_space<vmem>>, vector<8x128xf32>,
    } else {
    }
    %c0 = arith.constant 0 : index
    %c0_1 = arith.constant 0 : index
    %3 = vector.load %arg3[%c0, %c0_1] : memref<8x128xf32, #tpu.memory_space<vmem>>, vector<8x128xf32>
    %c0_2 = arith.constant 0 : index
    %c0_3 = arith.constant 0 : index
    %4 = vector.load %arg4[%c0_2, %c0_3] : memref<128x128xf32, #tpu.memory_space<vmem>>, vector<128x128xf32>
    %cst = arith.constant 0.000000e+00 : f32
    %5 = vector.broadcast %cst : f32 to vector<128x128xf32>
    %6 = arith.maximumf %4, %5 : vector<128x128xf32>
    %c0_4 = arith.constant 0 : index
    %c0_5 = arith.constant 0 : index
    %7 = vector.load %arg7[%c0_4, %c0_5] : memref<8x128xf32, #tpu.memory_space<vmem>>, vector<8x128xf32>
    %cst_6 = arith.constant dense<0.000000e+00> : vector<8x128xf32>
    %8 = tpu.matmul %3, %6, %cst_6 {dimension_numbers = #tpu.dot_dimension_numbers<[1], [1], [0], [0], [0, 0, 1, 0], [], []>} : vector<8x128xf32>, vector<128x128xf32>, vector<8x128xf32> -> vector<8x128xf32>
    %9 = arith.addf %7, %8 : vector<8x128xf32>
    %c0_7 = arith.constant 0 : index
    %c0_8 = arith.constant 0 : index
    %10 = vector.load %arg7[%c0_7, %c0_8] : memref<8x128xf32, #tpu.memory_space<vmem>>, vector<8x128xf32>
    tpu.vector_store %arg7[%c0_7, %c0_8], %9 {strides = array<i32>} : memref<8x128xf32, #tpu.memory_space<vmem>>, vector<8x128xf32>,
    %c0_i32_9 = arith.constant 0 : i32
    %11 = arith.cmpi eq, %arg2, %c0_i32_9 : i32
    %12 = arith.extui %11 : i1 to i32
    %c0_i32_10 = arith.constant 0 : i32
    %13 = arith.cmpi ne, %12, %c0_i32_10 : i32
    scf.if %13 {
      %c0_11 = arith.constant 0 : index
      %c0_12 = arith.constant 0 : index
      %14 = vector.load %arg7[%c0_11, %c0_12] : memref<8x128xf32, #tpu.memory_space<vmem>>, vector<8x128xf32>
      %c0_13 = arith.constant 0 : index
      %c0_14 = arith.constant 0 : index
      %15 = vector.load %arg5[%c0_13, %c0_14] : memref<1x128xf32, #tpu.memory_space<vmem>>, vector<1x128xf32>
      %16 = vector.broadcast %15 : vector<1x128xf32> to vector<8x128xf32>
      %17 = arith.addf %14, %16 : vector<8x128xf32>
      %c0_15 = arith.constant 0 : index
      %c0_16 = arith.constant 0 : index
      %18 = vector.load %arg6[%c0_15, %c0_16] : memref<8x128xf32, #tpu.memory_space<vmem>>, vector<8x128xf32>
      tpu.vector_store %arg6[%c0_15, %c0_16], %17 {strides = array<i32>} : memref<8x128xf32, #tpu.memory_space<vmem>>, vector<8x128xf32>,
    } else {
    }
    return
  }
  func.func @transform_0(%arg0: i32, %arg1: i32, %arg2: i32) -> (i32, i32) {
    %c0_i32 = arith.constant 0 : i32
    return %arg0, %arg2 : i32, i32
  }
  func.func @transform_1(%arg0: i32, %arg1: i32, %arg2: i32) -> (i32, i32) {
    %c0_i32 = arith.constant 0 : i32
    return %arg1, %arg2 : i32, i32
  }
  func.func @transform_2(%arg0: i32, %arg1: i32, %arg2: i32) -> (i32, i32) {
    %c0_i32 = arith.constant 0 : i32
    %c0_i32_0 = arith.constant 0 : i32
    return %c0_i32, %arg1 : i32, i32
  }
  func.func @transform_3(%arg0: i32, %arg1: i32, %arg2: i32) -> (i32, i32) {
    %c0_i32 = arith.constant 0 : i32
    return %arg0, %arg1 : i32, i32
  }
}

</mosaic_0001>

<llo_original>
// kernel: tpu_custom_call.1
$region0: #{tpu_custom_call.1}
  #allocation0 [shape = 'u32[]', space=smem, size = 0x4, offset = 0x4, fixed_abs, tag = 'smem constant byte address 0x4 - core index']
  #allocation1 [shape = 'u32[72,128]{1,0:T(1,128)}', space=vmem, size = 0x9000, scoped, tag = 'internal scratch']
  #allocation2 [shape = 'f32[8,128]{1,0:T(8,128)}', space=vmem, size = 0x1000, scoped, tag = 'scratch operand']
  %s0 = inlined_call_operand.hbm [shape: f32[8,128], index: 0, kind: input, shape index: {}]
  %s1 = inlined_call_operand.hbm [shape: f32[128,128], index: 1, kind: input, shape index: {}]
  %s2 = inlined_call_operand.vmem [shape: f32[1,128], index: 2, kind: input, shape index: {}]
  %s3 = inlined_call_operand.hbm [shape: f32[8,128], index: 3, kind: output, shape index: {}]
  %s4 = sld [smem:[#allocation0]]
  $region38: #{tpu_custom_call.1} parent=0
    _
  %s6 = ssub.s32 1, %s4
  %s7 = scalar_select 0, %s6, %s4
  $region1: #{tpu_custom_call.1} parent=0
    #allocation3 [shape = 'u8[4096]{0}', space=vmem, size = 0x1000, scoped, tag = 'input window, operand 0, single buffered']
    #allocation4 [shape = 's32[1]{0}', space=sflag, size = 0x4, scoped, tag = 'scoped memory for tpu_custom_call.1']
    #allocation5 [shape = 's32[1]{0}', space=sflag, size = 0x4, scoped, tag = 'scoped memory for tpu_custom_call.1']
    #allocation6 [shape = 'u8[65536]{0}', space=vmem, size = 0x10000, scoped, tag = 'input window, operand 1, single buffered']
    #allocation7 [shape = 's32[1]{0}', space=sflag, size = 0x4, scoped, tag = 'scoped memory for tpu_custom_call.1']
    #allocation8 [shape = 'u8[4096]{0}', space=vmem, size = 0x1000, scoped, tag = 'output window, operand 0, single buffered']
    %8 = vsyncpa [#allocation4], 0
    %9 = vsyncpa [#allocation7], 0
    %10 = vsyncpa [#allocation5], 0
    // Predicated region
    $region2: #{tpu_custom_call.1} parent=1 // pred_check
      _
    $region3: #{tpu_custom_call.1} parent=1 // pred_check_branch
      %12 = sbr.rel (0) target = $region5
    $region4: #{tpu_custom_call.1} parent=1 // pred_region
      %14 = vsyncadd [#allocation4], 0
      %s16 = sshll.u32 %s0, 4
      %s17 = int_to_ptr.hbm [resolvable:$true] %s16
      %s18 = sshll.u32 [#allocation3], 4
      %s19 = int_to_ptr.vmem [resolvable:$true] %s18
      %21 = dma.hbm_to_vmem [thread:$0]  %s17, 128, %s19, [#allocation4]
    $region5: #{tpu_custom_call.1} parent=1 // pred_fallthru
      _
    // Predicated region
    $region6: #{tpu_custom_call.1} parent=1 // pred_check
      _
    $region7: #{tpu_custom_call.1} parent=1 // pred_check_branch
      %23 = sbr.rel (0) target = $region9
    $region8: #{tpu_custom_call.1} parent=1 // pred_region
      %25 = vsyncadd [#allocation7], 0
      %s26 = sshll.u32 %s1, 4
      %s27 = int_to_ptr.hbm [resolvable:$true] %s26
      %s28 = sshll.u32 [#allocation6], 4
      %s29 = int_to_ptr.vmem [resolvable:$true] %s28
      %34 = dma.hbm_to_vmem [thread:$0]  %s27, 2048, %s29, [#allocation7], 128, 128, 8
    $region9: #{tpu_custom_call.1} parent=1 // pred_fallthru
      _
    // Predicated region
    $region10: #{tpu_custom_call.1} parent=1 // pred_check
      _
    $region11: #{tpu_custom_call.1} parent=1 // pred_check_branch
      %36 = sbr.rel (0) target = $region13
    $region12: #{tpu_custom_call.1} parent=1 // pred_region
      _
    $region13: #{tpu_custom_call.1} parent=1 // pred_fallthru
      _
    // Predicated region
    $region14: #{tpu_custom_call.1} parent=1 // pred_check
      _
    $region15: #{tpu_custom_call.1} parent=1 // pred_check_branch
      %38 = sbr.rel (0) target = $region17
    $region16: #{tpu_custom_call.1} parent=1 // pred_region
      %40 = dma.done [#allocation4], 128
    $region17: #{tpu_custom_call.1} parent=1 // pred_fallthru
      _
    // Predicated region
    $region18: #{tpu_custom_call.1} parent=1 // pred_check
      _
    $region19: #{tpu_custom_call.1} parent=1 // pred_check_branch
      %42 = sbr.rel (0) target = $region21
    $region20: #{tpu_custom_call.1} parent=1 // pred_region
      %44 = dma.done [#allocation7], 2048
    $region21: #{tpu_custom_call.1} parent=1 // pred_fallthru
      _
    %p45 = scmp.eq.s32.totalorder 0, 0
    // Predicated region
    $region22: #{tpu_custom_call.1} parent=1 // pred_check
      %p46 = pneg %p45
    $region23: #{tpu_custom_call.1} parent=1 // pred_check_branch
      %48 = sbr.rel (%p46) target = $region25
    $region24: #{tpu_custom_call.1} parent=1 // pred_region
      %49 = vst [vmem:[#allocation2] sm:$0xff] 0.0
    $region25: #{tpu_custom_call.1} parent=1 // pred_fallthru
      _
    %v50 = vld [vmem:[#allocation3] sm:$0xff]
    %v51 = vld [vmem:[#allocation6] sm:$0xff]
    %v52 = vld [vmem:[#allocation6 + $0x8] sm:$0xff]
    %v53 = vld [vmem:[#allocation6 + $0x10] sm:$0xff]
    %v54 = vld [vmem:[#allocation6 + $0x18] sm:$0xff]
    %v55 = vld [vmem:[#allocation6 + $0x20] sm:$0xff]
    %v56 = vld [vmem:[#allocation6 + $0x28] sm:$0xff]
    %v57 = vld [vmem:[#allocation6 + $0x30] sm:$0xff]
    %v58 = vld [vmem:[#allocation6 + $0x38] sm:$0xff]
    %v59 = vld [vmem:[#allocation6 + $0x40] sm:$0xff]
    %v60 = vld [vmem:[#allocation6 + $0x48] sm:$0xff]
    %v61 = vld [vmem:[#allocation6 + $0x50] sm:$0xff]
    %v62 = vld [vmem:[#allocation6 + $0x58] sm:$0xff]
    %v63 = vld [vmem:[#allocation6 + $0x60] sm:$0xff]
    %v64 = vld [vmem:[#allocation6 + $0x68] sm:$0xff]
    %v65 = vld [vmem:[#allocation6 + $0x70] sm:$0xff]
    %v66 = vld [vmem:[#allocation6 + $0x78] sm:$0xff]
    %v67 = vmax.f32 %v51, 0.0
    %v68 = vmax.f32 %v52, 0.0
    %v69 = vmax.f32 %v53, 0.0
    %v70 = vmax.f32 %v54, 0.0
    %v71 = vmax.f32 %v55, 0.0
    %v72 = vmax.f32 %v56, 0.0
    %v73 = vmax.f32 %v57, 0.0
    %v74 = vmax.f32 %v58, 0.0
    %v75 = vmax.f32 %v59, 0.0
    %v76 = vmax.f32 %v60, 0.0
    %v77 = vmax.f32 %v61, 0.0
    %v78 = vmax.f32 %v62, 0.0
    %v79 = vmax.f32 %v63, 0.0
    %v80 = vmax.f32 %v64, 0.0
    %v81 = vmax.f32 %v65, 0.0
    %v82 = vmax.f32 %v66, 0.0
    %v83 = vld [vmem:[#allocation2] sm:$0xff]
    %84 = vmatpush.xpose.msra.mxu0 %v82
    %85 = vmatpush.xpose.msra.mxu0 %v81
    %86 = vmatpush.xpose.msra.mxu0 %v80
    %87 = vmatpush.xpose.msra.mxu0 %v79
    %88 = vmatpush.xpose.msra.mxu0 %v78
    %89 = vmatpush.xpose.msra.mxu0 %v77
    %90 = vmatpush.xpose.msra.mxu0 %v76
    %91 = vmatpush.xpose.msra.mxu0 %v75
    %92 = vmatpush.xpose.msra.mxu0 %v74
    %93 = vmatpush.xpose.msra.mxu0 %v73
    %94 = vmatpush.xpose.msra.mxu0 %v72
    %95 = vmatpush.xpose.msra.mxu0 %v71
    %96 = vmatpush.xpose.msra.mxu0 %v70
    %97 = vmatpush.xpose.msra.mxu0 %v69
    %98 = vmatpush.xpose.msra.mxu0 %v68
    %99 = vmatpush.xpose.msra.mxu0 %v67
    %100 = vmatmul.f32.gmra.mxu0 %v50
    %v101 = vpop.f32.mrf.mxu0
    %v102 = vadd.f32 0.0, %v101
    %103 = vdwg.mxu0
    %v104 = vadd.f32 %v83, %v102
    %105 = vst [vmem:[#allocation2] sm:$0xff] %v104
    // Predicated region
    $region26: #{tpu_custom_call.1} parent=1 // pred_check
      %p106 = pneg %p45
    $region27: #{tpu_custom_call.1} parent=1 // pred_check_branch
      %108 = sbr.rel (%p106) target = $region29
    $region28: #{tpu_custom_call.1} parent=1 // pred_region
      %v109 = vld [vmem:[#allocation2] sm:$0xff]
      %v110 = vld [vmem:[%s2] sm:$0x1]
      %v112 = vperm.slane %v110, 0
      %v114 = vadd.f32 %v109, %v112
      %115 = vst [vmem:[#allocation8] sm:$0xff] %v114
    $region29: #{tpu_custom_call.1} parent=1 // pred_fallthru
      _
    // Predicated region
    $region30: #{tpu_custom_call.1} parent=1 // pred_check
      _
    $region31: #{tpu_custom_call.1} parent=1 // pred_check_branch
      %117 = sbr.rel (0) target = $region33
    $region32: #{tpu_custom_call.1} parent=1 // pred_region
      %119 = vsyncadd [#allocation5], 0
      %s121 = sshll.u32 [#allocation8], 4
      %s122 = int_to_ptr.vmem [resolvable:$true] %s121
      %s123 = sshll.u32 %s3, 4
      %s124 = int_to_ptr.hbm [resolvable:$true] %s123
      %126 = dma.vmem_to_hbm [thread:$0]  %s122, 128, %s124, [#allocation5]
    $region33: #{tpu_custom_call.1} parent=1 // pred_fallthru
      _
    // Predicated region
    $region34: #{tpu_custom_call.1} parent=1 // pred_check
      _
    $region35: #{tpu_custom_call.1} parent=1 // pred_check_branch
      %128 = sbr.rel (0) target = $region37
    $region36: #{tpu_custom_call.1} parent=1 // pred_region
      %130 = dma.done [#allocation5], 128
    $region37: #{tpu_custom_call.1} parent=1 // pred_fallthru
      _
    %131 = vsyncpa [#allocation4], 1
    %132 = vsyncpa [#allocation7], 1
    %133 = vsyncpa [#allocation5], 1

</llo_original>
